<compile_context>
chip_gen: v6e
topology: v6e:2x2x1
jax: 0.10.0
libtpu: 0.0.40
codegen_flags: <defaults>
</compile_context>

<pallas_src>
import math

import jax
import jax.numpy as jnp
import numpy as np
from jax.experimental import pallas as pl
from jax.experimental.pallas import tpu as pltpu


# ---------------------------------------------------------------------------
# Pallas kernel: one fused matmul + bias per (phase, pixel-tile) grid step.
# ---------------------------------------------------------------------------
def _deconv_phase_kernel(x_ref, w_ref, b_ref, o_ref):
    # x_ref: (1, Ck, TR)    im2col'd input columns for one (phase, tile)
    # w_ref: (1, Cout, Ck)  flattened per-phase weight (resident across tiles)
    # b_ref: (Cout, 1)
    # o_ref: (1, Cout, TR)  lane-dense output (TR is a multiple of 128)
    acc = jnp.dot(w_ref[0], x_ref[0], preferred_element_type=jnp.float32)
    o_ref[0] = (acc + b_ref[...]).astype(o_ref.dtype)


def _round_up(a, b):
    return -(-a // b) * b


# ---------------------------------------------------------------------------
# Wrapper: NCHW ConvTranspose2d semantics (stride, padding).
# ---------------------------------------------------------------------------
def deconv_module_forward(x, weight, bias, *, stride, padding):
    """x: (N, Cin, H, W); weight: (Cin, Cout, K, K); bias: (Cout,). Returns NCHW."""
    N, Cin, H, W = x.shape
    _, Cout, K, _ = weight.shape
    s = int(stride)
    OH = (H - 1) * s - 2 * padding + K
    OW = (W - 1) * s - 2 * padding + K
    eff_pad = K - 1 - padding          # padding of the equivalent regular conv

    # --- sub-pixel phase bookkeeping (all static Python; K, s are small) ----
    Tm = -(-K // s)                    # taps per phase per spatial dim
    Qh, Qw = -(-OH // s), -(-OW // s)  # per-phase output grid
    phase = []                         # (first tap k0, input offset d) per phase
    for r in range(s):
        k0 = (eff_pad - r) % s
        phase.append((k0, (r + k0 - eff_pad) // s))
    pad_lo = max(0, -min(d for _, d in phase))
    pad_hi_h = max(0, max(Qh - 1 + d + Tm - 1 for _, d in phase) - (H - 1))
    pad_hi_w = max(0, max(Qw - 1 + d + Tm - 1 for _, d in phase) - (W - 1))
    xp = jnp.pad(x, ((0, 0), (0, 0), (pad_lo, pad_hi_h), (pad_lo, pad_hi_w)))

    # flipped ConvTranspose2d weight: wf[kh, kw, ci, co] = W[ci, co, K-1-kh, K-1-kw]
    w_flip = weight[:, :, ::-1, ::-1]          # (Cin, Cout, K, K)

    Ck = Tm * Tm * Cin
    R = Qh * Qw
    NR = N * R
    xcols, wcols = [], []
    for rh in range(s):
        k0h, dh = phase[rh]
        for rw in range(s):
            k0w, dw = phase[rw]
            x_taps, w_taps = [], []
            for th in range(Tm):
                for tw in range(Tm):
                    kh, kw = k0h + s * th, k0w + s * tw
                    if kh < K and kw < K:
                        a0 = dh + th + pad_lo
                        b0 = dw + tw + pad_lo
                        x_taps.append(xp[:, :, a0:a0 + Qh, b0:b0 + Qw])
                        w_taps.append(w_flip[:, :, kh, kw])        # (Cin, Cout)
                    else:   # phantom tap when K is not a multiple of stride
                        x_taps.append(jnp.zeros((N, Cin, Qh, Qw), x.dtype))
                        w_taps.append(jnp.zeros((Cin, Cout), weight.dtype))
            # (N, taps, Cin, Qh, Qw) -> (N, Ck, R) -> (Ck, N*R)  (batch on lanes)
            xc = jnp.stack(x_taps, axis=1).reshape(N, Ck, R)
            xcols.append(xc.transpose(1, 0, 2).reshape(Ck, NR))
            wcols.append(jnp.stack(w_taps, axis=0).reshape(Ck, Cout).T)
    Xcol = jnp.stack(xcols, axis=0).astype(jnp.float32)   # (s*s, Ck, N*R)
    Wcol = jnp.stack(wcols, axis=0).astype(jnp.float32)   # (s*s, Cout, Ck)

    # --- pad to (8, 128)-friendly tiles -------------------------------------
    Ck_pad = _round_up(Ck, 8)
    Cout_pad = _round_up(Cout, 8)
    NR_pad = _round_up(NR, 128)
    TR = 2048
    while TR > 128 and 2 * 4 * (Ck_pad + Cout_pad) * TR > 4 * 1024 * 1024:
        TR //= 2                       # keep double-buffered tiles modest
    TR = min(TR, NR_pad)
    NR_pad = _round_up(NR_pad, TR)

    Xcol = jnp.pad(Xcol, ((0, 0), (0, Ck_pad - Ck), (0, NR_pad - NR)))
    Wcol = jnp.pad(Wcol, ((0, 0), (0, Cout_pad - Cout), (0, Ck_pad - Ck)))
    b2 = jnp.pad(bias.reshape(Cout, 1).astype(jnp.float32),
                 ((0, Cout_pad - Cout), (0, 0)))

    grid = (s * s, NR_pad // TR)
    out = pl.pallas_call(
        _deconv_phase_kernel,
        out_shape=jax.ShapeDtypeStruct((s * s, Cout_pad, NR_pad), jnp.float32),
        grid=grid,
        in_specs=[
            pl.BlockSpec((1, Ck_pad, TR), lambda ph, r: (ph, 0, r)),
            pl.BlockSpec((1, Cout_pad, Ck_pad), lambda ph, r: (ph, 0, 0)),
            pl.BlockSpec((Cout_pad, 1), lambda ph, r: (0, 0)),
        ],
        out_specs=pl.BlockSpec((1, Cout_pad, TR), lambda ph, r: (ph, 0, r)),
        compiler_params=pltpu.CompilerParams(
            dimension_semantics=("parallel", "parallel")),
    )(Xcol, Wcol, b2)

    # --- pixel-shuffle the s*s phases back into NCHW and crop ---------------
    out = out[:, :Cout, :NR].reshape(s, s, Cout, N, Qh, Qw)
    out = out.transpose(3, 2, 4, 0, 5, 1).reshape(N, Cout, Qh * s, Qw * s)
    return out[:, :, :OH, :OW]


# ---------------------------------------------------------------------------
# Deterministic parameter init (mirrors DeconvModule.init_weights).
# ---------------------------------------------------------------------------
def make_params(key, in_channels, out_channels, kernel_size):
    # xavier_normal_ on a (Cin, Cout, K, K) tensor:
    #   fan_in = Cout*K*K, fan_out = Cin*K*K, std = sqrt(2/(fan_in+fan_out))
    fan_in = out_channels * kernel_size * kernel_size
    fan_out = in_channels * kernel_size * kernel_size
    std = math.sqrt(2.0 / (fan_in + fan_out))
    w = std * jax.random.normal(
        key, (in_channels, out_channels, kernel_size, kernel_size), jnp.float32)
    b = jnp.zeros((out_channels,), jnp.float32)   # constant_(bias, 0)
    return w, b


def _reference(x, weight, bias, stride, padding):
    K = weight.shape[2]
    w_rot = jnp.transpose(weight[:, :, ::-1, ::-1], (1, 0, 2, 3))  # (Cout,Cin,K,K)
    return jax.lax.conv_general_dilated(
        x, w_rot, window_strides=(1, 1),
        padding=[(K - 1 - padding, K - 1 - padding)] * 2,
        lhs_dilation=(stride, stride),
        dimension_numbers=("NCHW", "OIHW", "NCHW"),
    ) + bias[None, :, None, None]


if __name__ == "__main__":
    # Primary config: typical 2x-upsampling deconv head.
    in_channels, out_channels = 4, 8
    kernel_size, stride, padding = 4, 2, 1

    key = jax.random.PRNGKey(0)
    k_x, k_w, k_x2, k_w2, k_b2 = jax.random.split(key, 5)

    x = jax.random.normal(k_x, (2, in_channels, 16, 16), jnp.float32)   # NCHW
    weight, bias = make_params(k_w, in_channels, out_channels, kernel_size)

    out = deconv_module_forward(x, weight, bias, stride=stride, padding=padding)
    out = jax.block_until_ready(out)

    assert out.shape == (2, out_channels, 32, 32), out.shape
    ref = _reference(x, weight, bias, stride, padding)
    np.testing.assert_allclose(np.asarray(out), np.asarray(ref), rtol=1e-4, atol=1e-4)

    # Secondary config: K not a multiple of stride, odd output, ragged channels
    # (exercises the phantom-tap, Cout/Ck padding and crop paths).
    x2 = jax.random.normal(k_x2, (1, 3, 7, 7), jnp.float32)
    w2, _ = make_params(k_w2, 3, 5, 3)
    b2 = 0.1 * jax.random.normal(k_b2, (5,), jnp.float32)
    out2 = deconv_module_forward(x2, w2, b2, stride=2, padding=1)
    out2 = jax.block_until_ready(out2)
    assert out2.shape == (1, 5, 13, 13), out2.shape
    ref2 = _reference(x2, w2, b2, 2, 1)
    np.testing.assert_allclose(np.asarray(out2), np.asarray(ref2), rtol=1e-4, atol=1e-4)

    print("KERNEL_OK")
</pallas_src>

<mosaic_0001>
module attributes {stable_mosaic.version = 11 : i64} {
  func.func @_deconv_phase_kernel(%arg0: i32, %arg1: i32, %arg2: memref<1x16x512xf32, #tpu.memory_space<vmem>>, %arg3: memref<1x8x16xf32, #tpu.memory_space<vmem>>, %arg4: memref<8x1xf32, #tpu.memory_space<vmem>>, %arg5: memref<1x8x512xf32, #tpu.memory_space<vmem>>) attributes {dimension_semantics = [#tpu.dimension_semantics<parallel>, #tpu.dimension_semantics<parallel>], iteration_bounds = array<i64: 4, 1>, scalar_prefetch = 0 : i64, scratch_operands = 0 : i64, tpu.core_type = #tpu.core_type<tc>, window_params = [{transform_indices = @transform_0, window_bounds = array<i64: 1, 16, 512>}, {transform_indices = @transform_1, window_bounds = array<i64: 1, 8, 16>}, {pipeline_mode = #tpu.pipeline_mode<synchronous>, transform_indices = @transform_2, window_bounds = array<i64: 8, 1>}, {transform_indices = @transform_3, window_bounds = array<i64: 1, 8, 512>}]} {
    %c0 = arith.constant 0 : index
    %c0_0 = arith.constant 0 : index
    %c0_1 = arith.constant 0 : index
    %0 = vector.load %arg3[%c0, %c0_0, %c0_1] : memref<1x8x16xf32, #tpu.memory_space<vmem>>, vector<1x8x16xf32>
    %1 = vector.shape_cast %0 : vector<1x8x16xf32> to vector<8x16xf32>
    %c0_2 = arith.constant 0 : index
    %c0_3 = arith.constant 0 : index
    %c0_4 = arith.constant 0 : index
    %2 = vector.load %arg2[%c0_2, %c0_3, %c0_4] : memref<1x16x512xf32, #tpu.memory_space<vmem>>, vector<1x16x512xf32>
    %3 = vector.shape_cast %2 : vector<1x16x512xf32> to vector<16x512xf32>
    %cst = arith.constant dense<0.000000e+00> : vector<8x512xf32>
    %4 = tpu.matmul %1, %3, %cst {dimension_numbers = #tpu.dot_dimension_numbers<[1], [0], [0], [1], [0, 0, 1, 1], [], []>} : vector<8x16xf32>, vector<16x512xf32>, vector<8x512xf32> -> vector<8x512xf32>
    %c0_5 = arith.constant 0 : index
    %c0_6 = arith.constant 0 : index
    %5 = vector.load %arg4[%c0_5, %c0_6] : memref<8x1xf32, #tpu.memory_space<vmem>>, vector<8x1xf32>
    %6 = vector.broadcast %5 : vector<8x1xf32> to vector<8x512xf32>
    %7 = arith.addf %4, %6 : vector<8x512xf32>
    %c0_7 = arith.constant 0 : index
    %c0_8 = arith.constant 0 : index
    %c0_9 = arith.constant 0 : index
    %8 = vector.load %arg5[%c0_7, %c0_8, %c0_9] : memref<1x8x512xf32, #tpu.memory_space<vmem>>, vector<1x8x512xf32>
    %9 = vector.shape_cast %8 : vector<1x8x512xf32> to vector<8x512xf32>
    %10 = vector.shape_cast %7 : vector<8x512xf32> to vector<1x8x512xf32>
    tpu.vector_store %arg5[%c0_7, %c0_8, %c0_9], %10 {strides = array<i32>} : memref<1x8x512xf32, #tpu.memory_space<vmem>>, vector<1x8x512xf32>,
    return
  }
  func.func @transform_0(%arg0: i32, %arg1: i32) -> (i32, i32, i32) {
    %c0_i32 = arith.constant 0 : i32
    %c0_i32_0 = arith.constant 0 : i32
    return %arg0, %c0_i32, %arg1 : i32, i32, i32
  }
  func.func @transform_1(%arg0: i32, %arg1: i32) -> (i32, i32, i32) {
    %c0_i32 = arith.constant 0 : i32
    %c0_i32_0 = arith.constant 0 : i32
    %c0_i32_1 = arith.constant 0 : i32
    return %arg0, %c0_i32, %c0_i32_0 : i32, i32, i32
  }
  func.func @transform_2(%arg0: i32, %arg1: i32) -> (i32, i32) {
    %c0_i32 = arith.constant 0 : i32
    %c0_i32_0 = arith.constant 0 : i32
    %c0_i32_1 = arith.constant 0 : i32
    return %c0_i32, %c0_i32_0 : i32, i32
  }
  func.func @transform_3(%arg0: i32, %arg1: i32) -> (i32, i32, i32) {
    %c0_i32 = arith.constant 0 : i32
    %c0_i32_0 = arith.constant 0 : i32
    return %arg0, %c0_i32, %arg1 : i32, i32, i32
  }
}

</mosaic_0001>

<llo_original>
// kernel: tpu_custom_call.1
$region0: #{tpu_custom_call.1}
  #allocation0 [shape = 'u32[]', space=smem, size = 0x4, offset = 0x4, fixed_abs, tag = 'smem constant byte address 0x4 - core index']
  #allocation1 [shape = 'u32[144,128]{1,0:T(1,128)}', space=vmem, size = 0x12000, scoped, tag = 'internal scratch']
  %s0 = inlined_call_operand.hbm [shape: f32[4,16,512], index: 0, kind: input, shape index: {}]
  %s1 = inlined_call_operand.hbm [shape: f32[4,8,16], index: 1, kind: input, shape index: {}]
  %s2 = inlined_call_operand.vmem [shape: f32[8,1], index: 2, kind: input, shape index: {}]
  %s3 = inlined_call_operand.hbm [shape: f32[4,8,512], index: 3, kind: output, shape index: {}]
  %s4 = sld [smem:[#allocation0]]
  $region53: #{tpu_custom_call.1} parent=0
    _
  %s6 = ssub.s32 1, %s4
  %s7 = scalar_select 0, %s6, %s4
  $region1: #{tpu_custom_call.1} parent=0
    #allocation2 [shape = 'u8[65536]{0}', space=vmem, size = 0x10000, scoped, tag = 'input window, operand 0']
    #allocation3 [shape = 's32[2]{0}', space=sflag, size = 0x8, scoped, tag = 'scoped memory for tpu_custom_call.1']
    #allocation4 [shape = 's32[2]{0}', space=sflag, size = 0x8, scoped, tag = 'scoped memory for tpu_custom_call.1']
    #allocation5 [shape = 'u8[8192]{0}', space=vmem, size = 0x2000, scoped, tag = 'input window, operand 1']
    #allocation6 [shape = 's32[2]{0}', space=sflag, size = 0x8, scoped, tag = 'scoped memory for tpu_custom_call.1']
    #allocation7 [shape = 'u8[32768]{0}', space=vmem, size = 0x8000, scoped, tag = 'output window, operand 0']
    %8 = vsyncpa [#allocation3], 0
    %s9 = scalar_lea.sflag [#allocation3], 1
    %10 = vsyncpa %s9, 0
    %11 = vsyncpa [#allocation6], 0
    %s12 = scalar_lea.sflag [#allocation6], 1
    %13 = vsyncpa %s12, 0
    %14 = vsyncpa [#allocation4], 0
    %s15 = scalar_lea.sflag [#allocation4], 1
    %16 = vsyncpa %s15, 0
    loop: start=0, step=1, limit=6
    $region2: #{tpu_custom_call.1} parent=1 // loop_pre_header
      _
    $region3: #{tpu_custom_call.1} parent=1 // loop_header
      %s18 = sphi 0, %s22
      %p19 = scmp.ge.s32.totalorder %s18, 6
      %s25 = sphi 0, %s37
      %s26 = sphi 0, %s33
      %s27 = sphi 0, %s25
      %s28 = sphi 0, %s26
      %s29 = sphi 0, %s27
      %s30 = sphi 0, %s28
      %s42 = sphi 0, %s44
      %s45 = sphi 0, %s42
      %s46 = sphi 0, %s45
      %s62 = sphi 0, %s46
      %s68 = sphi 0, %s70
      %s71 = sphi 0, %s68
      %s72 = sphi 0, %s71
      %s88 = sphi 0, %s72
      %s92 = sphi 0, %s92
      %s94 = sphi 0, %s92
      %s95 = sphi 0, %s94
      %s109 = sphi 0, %s95
      %s117 = sphi 0, %s119
      %s120 = sphi 0, %s117
      %s121 = sphi 0, %s120
      %s137 = sphi 0, %s121
    $region4: #{tpu_custom_call.1} parent=1 // loop_header_branch
      %21 = sbr.rel (%p19) target = $region8
    $region5: #{tpu_custom_call.1} parent=1 // loop_body
      %s23 = ssub.s32 %s18, 1
      %s24 = ssub.s32 %s18, 2
      %s31 = sadd.s32 1, %s26
      %p32 = scmp.ge.s32.totalorder %s31, 1
      %s33 = scalar_select %p32, 0, %s31
      %s34 = sadd.s32 1, %s25
      %s35 = scalar_select %p32, %s34, %s25
      %p36 = scmp.ge.s32.totalorder %s35, 4
      %s37 = scalar_select %p36, 0, %s35
      %s38 = ssub.s32 %s25, %s37
      %s39 = ssub.s32 %s26, %s33
      %s40 = sor.u32 %s38, %s39
      %p41 = scmp.eq.s32.totalorder %s40, 0
      %s43 = sadd.s32 %s42, 1
      %s44 = scalar_select %p41, %s42, %s43
      %p47 = pneg %p41
      %p48 = scmp.eq.s32.totalorder %s18, 3
      %p49 = por %p47, %p48
      %p50 = scmp.ne.s32.totalorder %s42, %s45
      %p51 = scmp.eq.s32.totalorder %s18, 0
      %p52 = por %p50, %p51
      %p53 = scmp.ne.s32.totalorder %s42, %s45
      %p54 = scmp.eq.s32.totalorder %s23, 3
      %p55 = por %p53, %p54
      %p56 = scmp.ne.s32.totalorder %s45, %s46
      %p57 = scmp.eq.s32.totalorder %s23, 0
      %p58 = por %p56, %p57
      %p59 = scmp.ne.s32.totalorder %s45, %s46
      %p60 = scmp.eq.s32.totalorder %s24, 3
      %p61 = por %p59, %p60
      %p63 = scmp.ne.s32.totalorder %s46, %s62
      %p64 = scmp.eq.s32.totalorder %s24, 0
      %p65 = por %p63, %p64
      %s66 = ssub.s32 %s25, %s37
      %p67 = scmp.eq.s32.totalorder %s66, 0
      %s69 = sadd.s32 %s68, 1
      %s70 = scalar_select %p67, %s68, %s69
      %p73 = pneg %p67
      %p74 = scmp.eq.s32.totalorder %s18, 3
      %p75 = por %p73, %p74
      %p76 = scmp.ne.s32.totalorder %s68, %s71
      %p77 = scmp.eq.s32.totalorder %s18, 0
      %p78 = por %p76, %p77
      %p79 = scmp.ne.s32.totalorder %s68, %s71
      %p80 = scmp.eq.s32.totalorder %s23, 3
      %p81 = por %p79, %p80
      %p82 = scmp.ne.s32.totalorder %s71, %s72
      %p83 = scmp.eq.s32.totalorder %s23, 0
      %p84 = por %p82, %p83
      %p85 = scmp.ne.s32.totalorder %s71, %s72
      %p86 = scmp.eq.s32.totalorder %s24, 3
      %p87 = por %p85, %p86
      %p89 = scmp.ne.s32.totalorder %s72, %s88
      %p90 = scmp.eq.s32.totalorder %s24, 0
      %p91 = por %p89, %p90
      %s93 = sadd.s32 %s92, 1
      %p96 = scmp.eq.s32.totalorder %s18, 3
      %p97 = scmp.ne.s32.totalorder %s92, %s94
      %p98 = scmp.eq.s32.totalorder %s18, 0
      %p99 = por %p97, %p98
      %p100 = scmp.ne.s32.totalorder %s92, %s94
      %p101 = scmp.eq.s32.totalorder %s23, 3
      %p102 = por %p100, %p101
      %p103 = scmp.ne.s32.totalorder %s94, %s95
      %p104 = scmp.eq.s32.totalorder %s23, 0
      %p105 = por %p103, %p104
      %p106 = scmp.ne.s32.totalorder %s94, %s95
      %p107 = scmp.eq.s32.totalorder %s24, 3
      %p108 = por %p106, %p107
      %p110 = scmp.ne.s32.totalorder %s95, %s109
      %p111 = scmp.eq.s32.totalorder %s24, 0
      %p112 = por %p110, %p111
      %s113 = ssub.s32 %s25, %s37
      %s114 = ssub.s32 %s26, %s33
      %s115 = sor.u32 %s113, %s114
      %p116 = scmp.eq.s32.totalorder %s115, 0
      %s118 = sadd.s32 %s117, 1
      %s119 = scalar_select %p116, %s117, %s118
      %p122 = pneg %p116
      %p123 = scmp.eq.s32.totalorder %s18, 3
      %p124 = por %p122, %p123
      %p125 = scmp.ne.s32.totalorder %s117, %s120
      %p126 = scmp.eq.s32.totalorder %s18, 0
      %p127 = por %p125, %p126
      %p128 = scmp.ne.s32.totalorder %s117, %s120
      %p129 = scmp.eq.s32.totalorder %s23, 3
      %p130 = por %p128, %p129
      %p131 = scmp.ne.s32.totalorder %s120, %s121
      %p132 = scmp.eq.s32.totalorder %s23, 0
      %p133 = por %p131, %p132
      %p134 = scmp.ne.s32.totalorder %s120, %s121
      %p135 = scmp.eq.s32.totalorder %s24, 3
      %p136 = por %p134, %p135
      %p138 = scmp.ne.s32.totalorder %s121, %s137
      %p139 = scmp.eq.s32.totalorder %s24, 0
      %p140 = por %p138, %p139
      %p141 = scmp.le.s32.totalorder 1, %s18
      %p142 = scmp.lt.s32.totalorder %s18, 5
      %p143 = pnand %p141, %p142
      %p144 = pneg %p143
      // Predicated region
      $region9: #{tpu_custom_call.1} parent=5 // pred_check
        _
      $region10: #{tpu_custom_call.1} parent=5 // pred_check_branch
        %146 = sbr.rel (%p143) target = $region12
      $region11: #{tpu_custom_call.1} parent=5 // pred_region
        %s147 = ssub.s32 %s18, 1
        // Predicated region
        $region13: #{tpu_custom_call.1} parent=11 // pred_check
          %p148 = pneg %p105
        $region14: #{tpu_custom_call.1} parent=11 // pred_check_branch
          %150 = sbr.rel (%p148) target = $region16
        $region15: #{tpu_custom_call.1} parent=11 // pred_region
          _
        $region16: #{tpu_custom_call.1} parent=11 // pred_fallthru
          _
      $region12: #{tpu_custom_call.1} parent=5 // pred_fallthru
        _
      %p151 = scmp.lt.s32.totalorder %s18, 4
      // Predicated region
      $region17: #{tpu_custom_call.1} parent=5 // pred_check
        %p152 = pneg %p151
      $region18: #{tpu_custom_call.1} parent=5 // pred_check_branch
        %154 = sbr.rel (%p152) target = $region20
      $region19: #{tpu_custom_call.1} parent=5 // pred_region
        // Predicated region
        $region21: #{tpu_custom_call.1} parent=19 // pred_check
          %p155 = pneg %p52
        $region22: #{tpu_custom_call.1} parent=19 // pred_check_branch
          %157 = sbr.rel (%p155) target = $region24
        $region23: #{tpu_custom_call.1} parent=19 // pred_region
          %s158 = sand.u32 %s42, 1
          %s159 = scalar_lea.sflag [#allocation3], %s158
          %s160 = sand.u32 %s42, 1
          %s161 = smul.addr %s160, 64
          %s162 = scalar_lea.vmem [#allocation2], %s161
          %s163 = smul.u32 4, %s26
          %s165 = ssub.s32 1024, 1024
          %166 = vsyncadd %s159, %s165
          %s167 = smul.addr %s25, 8
          %s168 = sadd.s32 %s163, %s167
          %s169 = smul.addr %s168, 128
          %s170 = scalar_lea.hbm %s0, %s169
          %s171 = sshll.u32 %s162, 4
          %s172 = int_to_ptr.vmem [resolvable:$true] %s171
          %177 = dma.hbm_to_vmem [thread:$0]  %s170, 1024, %s172, %s159, 512, 512, 32
        $region24: #{tpu_custom_call.1} parent=19 // pred_fallthru
          _
        // Predicated region
        $region25: #{tpu_custom_call.1} parent=19 // pred_check
          %p178 = pneg %p78
        $region26: #{tpu_custom_call.1} parent=19 // pred_check_branch
          %180 = sbr.rel (%p178) target = $region28
        $region27: #{tpu_custom_call.1} parent=19 // pred_region
          %s181 = sand.u32 %s68, 1
          %s182 = scalar_lea.sflag [#allocation6], %s181
          %s183 = sand.u32 %s68, 1
          %s184 = smul.addr %s183, 8
          %s185 = scalar_lea.vmem [#allocation5], %s184
          %s187 = ssub.s32 128, 128
          %188 = vsyncadd %s182, %s187
          %s189 = smul.addr %s25, 128
          %s190 = scalar_lea.hbm %s1, %s189
          %s192 = sshll.u32 %s185, 4
          %s193 = int_to_ptr.vmem [resolvable:$true] %s192
          %195 = dma.hbm_to_vmem [thread:$0]  %s190, 128, %s193, %s182
        $region28: #{tpu_custom_call.1} parent=19 // pred_fallthru
          _
      $region20: #{tpu_custom_call.1} parent=5 // pred_fallthru
        _
      %p196 = scmp.le.s32.totalorder 1, %s18
      %p197 = scmp.lt.s32.totalorder %s18, 5
      %p198 = pnand %p196, %p197
      %p199 = pneg %p198
      // Predicated region
      $region29: #{tpu_custom_call.1} parent=5 // pred_check
        _
      $region30: #{tpu_custom_call.1} parent=5 // pred_check_branch
        %201 = sbr.rel (%p198) target = $region32
      $region31: #{tpu_custom_call.1} parent=5 // pred_region
        %s202 = ssub.s32 %s18, 1
        %s203 = sand.u32 %s45, 1
        %s204 = scalar_lea.sflag [#allocation3], %s203
        %s205 = sand.u32 %s45, 1
        %s206 = smul.addr %s205, 64
        %s207 = scalar_lea.vmem [#allocation2], %s206
        // Predicated region
        $region33: #{tpu_custom_call.1} parent=31 // pred_check
          %p208 = pneg %p58
        $region34: #{tpu_custom_call.1} parent=31 // pred_check_branch
          %210 = sbr.rel (%p208) target = $region36
        $region35: #{tpu_custom_call.1} parent=31 // pred_region
          %211 = dma.done %s204, 1024
        $region36: #{tpu_custom_call.1} parent=31 // pred_fallthru
          _
        %s212 = sand.u32 %s71, 1
        %s213 = scalar_lea.sflag [#allocation6], %s212
        %s214 = sand.u32 %s71, 1
        %s215 = smul.addr %s214, 8
        %s216 = scalar_lea.vmem [#allocation5], %s215
        // Predicated region
        $region37: #{tpu_custom_call.1} parent=31 // pred_check
          %p217 = pneg %p84
        $region38: #{tpu_custom_call.1} parent=31 // pred_check_branch
          %219 = sbr.rel (%p217) target = $region40
        $region39: #{tpu_custom_call.1} parent=31 // pred_region
          %220 = dma.done %s213, 128
        $region40: #{tpu_custom_call.1} parent=31 // pred_fallthru
          _
        %s221 = sand.u32 %s45, 1
        %s222 = scalar_lea.sflag [#allocation3], %s221
        %s223 = sand.u32 %s45, 1
        %s224 = smul.addr %s223, 64
        %s225 = scalar_lea.vmem [#allocation2], %s224
        %p226 = pneg %p58
        %p227 = pneg %p55
        %s228 = sand.u32 %s71, 1
        %s229 = scalar_lea.sflag [#allocation6], %s228
        %s230 = sand.u32 %s71, 1
        %s231 = smul.addr %s230, 8
        %s232 = scalar_lea.vmem [#allocation5], %s231
        %p233 = pneg %p84
        %p234 = pneg %p81
        %p235 = pneg %p105
        %p236 = pneg %p102
        %p237 = pneg %p133
        %p238 = pneg %p130
        %s239 = sand.u32 %s120, 1
        %s240 = scalar_lea.sflag [#allocation4], %s239
        %s241 = sand.u32 %s120, 1
        %s242 = smul.addr %s241, 32
        %s243 = scalar_lea.vmem [#allocation7], %s242
        %s244 = smul.u32 4, %s28
        %s245 = smul.u32 4, %s28
        %v246 = vld [vmem:[%s216] sm:$0xff]
        %v247 = vld [vmem:[%s207] sm:$0xff]
        %v248 = vld [vmem:[%s207 + $0x8] sm:$0xff]
        %v249 = vld [vmem:[%s207 + $0x10] sm:$0xff]
        %v250 = vld [vmem:[%s207 + $0x18] sm:$0xff]
        %v251 = vld [vmem:[%s207 + $0x20] sm:$0xff]
        %v252 = vld [vmem:[%s207 + $0x28] sm:$0xff]
        %v253 = vld [vmem:[%s207 + $0x30] sm:$0xff]
        %v254 = vld [vmem:[%s207 + $0x38] sm:$0xff]
        %v255 = vld [vmem:[%s2] sm:$0xff]
        %257 = vset.pattern.permute.xlu0 0
        %258 = vperm.xlu0 %257, %v255
        %v259 = vpop.permute.xlu0 %258
        %vm261 = vcmask 130048
        %v263 = vsel %vm261, %v246, 0
        %265 = vmatprep.subr.mxu0 0.0
        %266 = vmatpush1.msra.mxu0 0.0
        %267 = vmatprep.subr.mxu0 0.0
        %268 = vmatpush1.msra.mxu0 0.0
        %269 = vmatprep.subr.mxu0 0.0
        %270 = vmatpush1.msra.mxu0 0.0
        %271 = vmatprep.subr.mxu0 0.0
        %272 = vmatpush1.msra.mxu0 0.0
        %273 = vmatprep.subr.mxu0 0.0
        %274 = vmatpush1.msra.mxu0 0.0
        %275 = vmatprep.subr.mxu0 0.0
        %276 = vmatpush1.msra.mxu0 0.0
        %277 = vmatprep.subr.mxu0 0.0
        %278 = vmatpush1.msra.mxu0 0.0
        %279 = vmatprep.subr.mxu0 0.0
        %280 = vmatpush1.msra.mxu0 0.0
        %281 = vmatprep.subr.mxu0 0.0
        %282 = vmatpush1.msra.mxu0 0.0
        %283 = vmatprep.subr.mxu0 0.0
        %284 = vmatpush1.msra.mxu0 0.0
        %285 = vmatprep.subr.mxu0 0.0
        %286 = vmatpush1.msra.mxu0 0.0
        %287 = vmatprep.subr.mxu0 0.0
        %288 = vmatpush1.msra.mxu0 0.0
        %289 = vmatprep.subr.mxu0 0.0
        %290 = vmatpush1.msra.mxu0 0.0
        %291 = vmatprep.subr.mxu0 0.0
        %292 = vmatpush1.msra.mxu0 0.0
        %293 = vmatprep.subr.mxu0 %v252
        %294 = vmatpush1.msra.mxu0 %v251
        %295 = vmatprep.subr.mxu0 %v248
        %296 = vmatpush1.msra.mxu0 %v247
        %297 = vmatprep.subr.mxu0 0.0
        %298 = vmatpush2.msra.mxu0 0.0
        %299 = vmatprep.subr.mxu0 0.0
        %300 = vmatpush2.msra.mxu0 0.0
        %301 = vmatprep.subr.mxu0 0.0
        %302 = vmatpush2.msra.mxu0 0.0
        %303 = vmatprep.subr.mxu0 0.0
        %304 = vmatpush2.msra.mxu0 0.0
        %305 = vmatprep.subr.mxu0 0.0
        %306 = vmatpush2.msra.mxu0 0.0
        %307 = vmatprep.subr.mxu0 0.0
        %308 = vmatpush2.msra.mxu0 0.0
        %309 = vmatprep.subr.mxu0 0.0
        %310 = vmatpush2.msra.mxu0 0.0
        %311 = vmatprep.subr.mxu0 0.0
        %312 = vmatpush2.msra.mxu0 0.0
        %313 = vmatprep.subr.mxu0 0.0
        %314 = vmatpush2.msra.mxu0 0.0
        %315 = vmatprep.subr.mxu0 0.0
        %316 = vmatpush2.msra.mxu0 0.0
        %317 = vmatprep.subr.mxu0 0.0
        %318 = vmatpush2.msra.mxu0 0.0
        %319 = vmatprep.subr.mxu0 0.0
        %320 = vmatpush2.msra.mxu0 0.0
        %321 = vmatprep.subr.mxu0 0.0
        %322 = vmatpush2.msra.mxu0 0.0
        %323 = vmatprep.subr.mxu0 0.0
        %324 = vmatpush2.msra.mxu0 0.0
        %325 = vmatprep.subr.mxu0 0.0
        %326 = vmatpush2.msra.mxu0 0.0
        %327 = vmatprep.subr.mxu0 0.0
        %328 = vmatpush2.msra.mxu0 0.0
        %329 = vmatprep.mubr.f32.mxu0 0.0
        %330 = vmatmul.mubr.f32.gmra.mxu0 %v263
        %v331 = vpop.f32.mrf.mxu0
        %v332 = vadd.f32 %v259, %v331
        %v333 = vpop.f32.mrf.mxu0
        %v334 = vadd.f32 %v259, %v333
        %335 = vdwg.mxu0
        %336 = vmatprep.subr.mxu0 0.0
        %337 = vmatpush1.msra.mxu0 0.0
        %338 = vmatprep.subr.mxu0 0.0
        %339 = vmatpush1.msra.mxu0 0.0
        %340 = vmatprep.subr.mxu0 0.0
        %341 = vmatpush1.msra.mxu0 0.0
        %342 = vmatprep.subr.mxu0 0.0
        %343 = vmatpush1.msra.mxu0 0.0
        %344 = vmatprep.subr.mxu0 0.0
        %345 = vmatpush1.msra.mxu0 0.0
        %346 = vmatprep.subr.mxu0 0.0
        %347 = vmatpush1.msra.mxu0 0.0
        %348 = vmatprep.subr.mxu0 0.0
        %349 = vmatpush1.msra.mxu0 0.0
        %350 = vmatprep.subr.mxu0 0.0
        %351 = vmatpush1.msra.mxu0 0.0
        %352 = vmatprep.subr.mxu0 0.0
        %353 = vmatpush1.msra.mxu0 0.0
        %354 = vmatprep.subr.mxu0 0.0
        %355 = vmatpush1.msra.mxu0 0.0
        %356 = vmatprep.subr.mxu0 0.0
        %357 = vmatpush1.msra.mxu0 0.0
        %358 = vmatprep.subr.mxu0 0.0
        %359 = vmatpush1.msra.mxu0 0.0
        %360 = vmatprep.subr.mxu0 0.0
        %361 = vmatpush1.msra.mxu0 0.0
        %362 = vmatprep.subr.mxu0 0.0
        %363 = vmatpush1.msra.mxu0 0.0
        %364 = vmatprep.subr.mxu0 %v254
        %365 = vmatpush1.msra.mxu0 %v253
        %366 = vmatprep.subr.mxu0 %v250
        %367 = vmatpush1.msra.mxu0 %v249
        %368 = vmatprep.subr.mxu0 0.0
        %369 = vmatpush2.msra.mxu0 0.0
        %370 = vmatprep.subr.mxu0 0.0
        %371 = vmatpush2.msra.mxu0 0.0
        %372 = vmatprep.subr.mxu0 0.0
        %373 = vmatpush2.msra.mxu0 0.0
        %374 = vmatprep.subr.mxu0 0.0
        %375 = vmatpush2.msra.mxu0 0.0
        %376 = vmatprep.subr.mxu0 0.0
        %377 = vmatpush2.msra.mxu0 0.0
        %378 = vmatprep.subr.mxu0 0.0
        %379 = vmatpush2.msra.mxu0 0.0
        %380 = vmatprep.subr.mxu0 0.0
        %381 = vmatpush2.msra.mxu0 0.0
        %382 = vmatprep.subr.mxu0 0.0
        %383 = vmatpush2.msra.mxu0 0.0
        %384 = vmatprep.subr.mxu0 0.0
        %385 = vmatpush2.msra.mxu0 0.0
        %386 = vmatprep.subr.mxu0 0.0
        %387 = vmatpush2.msra.mxu0 0.0
        %388 = vmatprep.subr.mxu0 0.0
        %389 = vmatpush2.msra.mxu0 0.0
        %390 = vmatprep.subr.mxu0 0.0
        %391 = vmatpush2.msra.mxu0 0.0
        %392 = vmatprep.subr.mxu0 0.0
        %393 = vmatpush2.msra.mxu0 0.0
        %394 = vmatprep.subr.mxu0 0.0
        %395 = vmatpush2.msra.mxu0 0.0
        %396 = vmatprep.subr.mxu0 0.0
        %397 = vmatpush2.msra.mxu0 0.0
        %398 = vmatprep.subr.mxu0 0.0
        %399 = vmatpush2.msra.mxu0 0.0
        %400 = vmatprep.mubr.f32.mxu0 0.0
        %401 = vmatmul.mubr.f32.gmra.mxu0 %v263
        %v402 = vpop.f32.mrf.mxu0
        %v403 = vadd.f32 %v259, %v402
        %v404 = vpop.f32.mrf.mxu0
        %v405 = vadd.f32 %v259, %v404
        %406 = vdwg.mxu0
        %407 = vst [vmem:[%s243] sm:$0xff] %v332
        %408 = vst [vmem:[%s243 + $0x8] sm:$0xff] %v334
        %409 = vst [vmem:[%s243 + $0x10] sm:$0xff] %v403
        %410 = vst [vmem:[%s243 + $0x18] sm:$0xff] %v405
        %s411 = sand.u32 %s120, 1
        %s412 = scalar_lea.sflag [#allocation4], %s411
        %s413 = sand.u32 %s120, 1
        %s414 = smul.addr %s413, 32
        %s415 = scalar_lea.vmem [#allocation7], %s414
        // Predicated region
        $region41: #{tpu_custom_call.1} parent=31 // pred_check
          %p416 = pneg %p130
        $region42: #{tpu_custom_call.1} parent=31 // pred_check_branch
          %418 = sbr.rel (%p416) target = $region44
        $region43: #{tpu_custom_call.1} parent=31 // pred_region
          %s419 = smul.u32 4, %s28
          %s421 = ssub.s32 512, 512
          %422 = vsyncadd %s412, %s421
          %s423 = smul.addr %s27, 4
          %s424 = sadd.s32 %s419, %s423
          %s425 = smul.addr %s424, 128
          %s426 = scalar_lea.hbm %s3, %s425
          %s428 = sshll.u32 %s415, 4
          %s429 = int_to_ptr.vmem [resolvable:$true] %s428
          %431 = dma.vmem_to_hbm [thread:$0]  %s429, 512, %s426, %s412
        $region44: #{tpu_custom_call.1} parent=31 // pred_fallthru
          _
      $region32: #{tpu_custom_call.1} parent=5 // pred_fallthru
        _
      %p432 = scmp.le.s32.totalorder 2, %s18
      // Predicated region
      $region45: #{tpu_custom_call.1} parent=5 // pred_check
        %p433 = pneg %p432
      $region46: #{tpu_custom_call.1} parent=5 // pred_check_branch
        %435 = sbr.rel (%p433) target = $region48
      $region47: #{tpu_custom_call.1} parent=5 // pred_region
        %s436 = ssub.s32 %s18, 2
        // Predicated region
        $region49: #{tpu_custom_call.1} parent=47 // pred_check
          %p437 = pneg %p136
        $region50: #{tpu_custom_call.1} parent=47 // pred_check_branch
          %439 = sbr.rel (%p437) target = $region52
        $region51: #{tpu_custom_call.1} parent=47 // pred_region
          %s440 = sand.u32 %s121, 1
          %s441 = scalar_lea.sflag [#allocation4], %s440
          %s442 = sand.u32 %s121, 1
          %s443 = smul.addr %s442, 32
          %s444 = scalar_lea.vmem [#allocation7], %s443
          %445 = dma.done %s441, 512
        $region52: #{tpu_custom_call.1} parent=47 // pred_fallthru
          _
      $region48: #{tpu_custom_call.1} parent=5 // pred_fallthru
        _
    $region6: #{tpu_custom_call.1} parent=1 // loop_footer
      %s22 = sadd.s32 1, %s18
    $region7: #{tpu_custom_call.1} parent=1 // loop_footer_branch
      %17 = sbr.rel target = $region3
    $region8: #{tpu_custom_call.1} parent=1 // loop_exit
      _
    %446 = vsyncpa [#allocation3], 1
    %s447 = scalar_lea.sflag [#allocation3], 1
    %448 = vsyncpa %s447, 1
    %449 = vsyncpa [#allocation6], 1
    %s450 = scalar_lea.sflag [#allocation6], 1
    %451 = vsyncpa %s450, 1
    %452 = vsyncpa [#allocation4], 1
    %s453 = scalar_lea.sflag [#allocation4], 1
    %454 = vsyncpa %s453, 1

</llo_original>
